<compile_context>
chip_gen: v6e
topology: v6e:2x2x1
jax: 0.10.0
libtpu: 0.0.40
codegen_flags: <defaults>
</compile_context>

<pallas_src>
import functools

import jax
import jax.numpy as jnp
from jax.experimental import pallas as pl
from jax.experimental.pallas import tpu as pltpu

LANES = 128
MAX_TILE_ROWS = 1024  # (1024, 128) f32 tile = 512 KiB per buffer.


def _bce_sum_kernel(x_ref, o_ref, acc_ref, *, target_is_real):
    """Accumulate sum of BCE-with-logits(x, constant target) over grid axis 1."""
    i = pl.program_id(1)

    @pl.when(i == 0)
    def _():
        acc_ref[...] = jnp.zeros_like(acc_ref)

    x = x_ref[...].astype(jnp.float32)
    # Numerically-stable BCEWithLogits against a constant target, specialized
    # at trace time (matches torch.nn.BCEWithLogitsLoss):
    #   t = 1: max(-x, 0) + log1p(exp(-|x|))
    #   t = 0: max( x, 0) + log1p(exp(-|x|))
    if target_is_real:
        lin = jnp.maximum(-x, 0.0)
    else:
        lin = jnp.maximum(x, 0.0)
    per_elem = lin + jnp.log1p(jnp.exp(-jnp.abs(x)))

    # Fold the (tile_rows, 128) tile into the (8, 128) vreg-shaped accumulator
    # with plain vreg adds; no cross-lane work in the hot loop.
    acc_ref[...] += jnp.sum(per_elem.reshape(-1, 8, LANES), axis=0)

    @pl.when(i == pl.num_programs(1) - 1)
    def _():
        o_ref[...] = acc_ref[...]


def _bce_per_elem_f32(x, target_is_real):
    t = jnp.float32(1.0 if target_is_real else 0.0)
    return jnp.maximum(x, 0.0) - x * t + jnp.log1p(jnp.exp(-jnp.abs(x)))


def gan_loss(predictions, target_is_real, *, loss_function="standard",
             topk=None, real_target_label=1.0, fake_target_label=0.0):
    """JAX/Pallas equivalent of GANLoss.forward.

    predictions: any-shape float array (e.g. NCHW discriminator logits).
    target_is_real: Python bool.
    Returns a float32 scalar (mean BCE-with-logits against a constant target).
    """
    if loss_function != "standard":
        raise NotImplementedError(
            f"loss function {loss_function} not implemented")
    target_is_real = bool(target_is_real)

    if topk is not None:
        # torch.topk(predictions, topk, dim=0)[0] -- values only. Plain-JAX
        # glue (data-dependent selection, not the hot path).
        moved = jnp.moveaxis(predictions, 0, -1)
        vals = jax.lax.top_k(moved, topk)[0]
        predictions = jnp.moveaxis(vals, -1, 0)

    # NOTE: like the PyTorch module (ones_like / zeros_like), the effective
    # target is 1.0 for real, 0.0 for fake; label kwargs are kept for parity.
    x = predictions
    if x.dtype not in (jnp.float32, jnp.bfloat16):
        x = x.astype(jnp.float32)

    flat = jnp.ravel(x)
    n_total = flat.shape[0]
    if n_total == 0:
        # Guard: mean over zero elements (torch would return nan as well).
        return jnp.float32(float("nan"))

    row_gran = 16 if x.dtype == jnp.bfloat16 else 8
    rows_avail = n_total // LANES
    tile_rows = min(MAX_TILE_ROWS, (rows_avail // row_gran) * row_gran)

    total = jnp.float32(0.0)
    n_main = 0
    if tile_rows > 0:
        n_tiles = rows_avail // tile_rows
        n_par = 2 if n_tiles >= 2 else 1     # 2 TensorCores on v7x.
        n_inner = n_tiles // n_par
        main_rows = n_par * n_inner * tile_rows
        n_main = main_rows * LANES

        if n_main == n_total:
            x2d = flat.reshape(main_rows, LANES)
        else:
            x2d = flat[:n_main].reshape(main_rows, LANES)

        kernel = functools.partial(_bce_sum_kernel,
                                   target_is_real=target_is_real)
        itemsize = int(jnp.dtype(x2d.dtype).itemsize)
        cost = pl.CostEstimate(
            flops=int(5 * n_main),
            transcendentals=int(2 * n_main),
            bytes_accessed=int(n_main * itemsize + n_par * 8 * LANES * 4),
        )

        partials = pl.pallas_call(
            kernel,
            out_shape=jax.ShapeDtypeStruct((n_par * 8, LANES), jnp.float32),
            grid_spec=pltpu.PrefetchScalarGridSpec(
                num_scalar_prefetch=0,
                grid=(n_par, n_inner),
                in_specs=[pl.BlockSpec(
                    (tile_rows, LANES),
                    lambda c, i: (c * n_inner + i, 0))],
                out_specs=pl.BlockSpec((8, LANES), lambda c, i: (c, 0)),
                scratch_shapes=[pltpu.VMEM((8, LANES), jnp.float32)],
            ),
            compiler_params=pltpu.CompilerParams(
                dimension_semantics=("parallel", "arbitrary")),
            cost_estimate=cost,
        )(x2d)
        total = total + jnp.sum(partials)

    # Tail (less than one tile, or everything if the input is tiny): plain jnp.
    if n_main < n_total:
        tail = flat[n_main:].astype(jnp.float32)
        total = total + jnp.sum(_bce_per_elem_f32(tail, target_is_real))

    return total / jnp.float32(n_total)


def _reference_bce_with_logits(predictions, target_is_real):
    x = jnp.ravel(predictions).astype(jnp.float32)
    return jnp.mean(_bce_per_elem_f32(x, target_is_real))


if __name__ == "__main__":
    key = jax.random.PRNGKey(0)
    k1, k2, k3 = jax.random.split(key, 3)

    # Small discriminator-logit-shaped input, NCHW.
    x = jax.random.normal(k1, (2, 4, 16, 16), dtype=jnp.float32) * 2.0

    loss_real = jax.block_until_ready(gan_loss(x, True))
    loss_fake = jax.block_until_ready(gan_loss(x, False))
    ref_real = _reference_bce_with_logits(x, True)
    ref_fake = _reference_bce_with_logits(x, False)
    assert jnp.allclose(loss_real, ref_real, atol=1e-5, rtol=1e-5), (
        loss_real, ref_real)
    assert jnp.allclose(loss_fake, ref_fake, atol=1e-5, rtol=1e-5), (
        loss_fake, ref_fake)

    # topk path (torch.topk(predictions, k, dim=0)[0]).
    loss_topk = jax.block_until_ready(gan_loss(x, True, topk=1))
    ref_topk = _reference_bce_with_logits(
        jnp.moveaxis(jax.lax.top_k(jnp.moveaxis(x, 0, -1), 1)[0], -1, 0), True)
    assert jnp.allclose(loss_topk, ref_topk, atol=1e-5, rtol=1e-5), (
        loss_topk, ref_topk)

    # Ragged shape -> exercises kernel-prefix + jnp-tail split (no pad copy).
    y = jax.random.normal(k2, (2, 3, 17, 19), dtype=jnp.float32) * 3.0
    loss_y = jax.block_until_ready(gan_loss(y, False))
    ref_y = _reference_bce_with_logits(y, False)
    assert jnp.allclose(loss_y, ref_y, atol=1e-5, rtol=1e-5), (loss_y, ref_y)

    # Larger input -> exercises multi-tile grid + 2-way parallel leading axis.
    z = jax.random.normal(k3, (2, 4, 256, 128), dtype=jnp.float32)
    loss_z = jax.block_until_ready(gan_loss(z, True))
    ref_z = _reference_bce_with_logits(z, True)
    assert jnp.allclose(loss_z, ref_z, atol=1e-5, rtol=1e-5), (loss_z, ref_z)

    # bf16 logits streamed as bf16 (cast to f32 inside the kernel).
    xb = x.astype(jnp.bfloat16)
    loss_b = jax.block_until_ready(gan_loss(xb, True))
    ref_b = _reference_bce_with_logits(xb, True)
    assert jnp.allclose(loss_b, ref_b, atol=1e-4, rtol=1e-4), (loss_b, ref_b)

    print("KERNEL_OK")
</pallas_src>

<mosaic_0001>
module attributes {stable_mosaic.version = 11 : i64} {
  func.func @_bce_sum_kernel(%arg0: i32, %arg1: i32, %arg2: memref<16x128xf32, #tpu.memory_space<vmem>>, %arg3: memref<8x128xf32, #tpu.memory_space<vmem>>, %arg4: memref<8x128xf32, #tpu.memory_space<vmem>>) attributes {dimension_semantics = [#tpu.dimension_semantics<parallel>, #tpu.dimension_semantics<arbitrary>], iteration_bounds = array<i64: 1, 1>, scalar_prefetch = 0 : i64, scratch_operands = 1 : i64, tpu.core_type = #tpu.core_type<tc>, window_params = [{transform_indices = @transform_0, window_bounds = array<i64: 16, 128>}, {transform_indices = @transform_1, window_bounds = array<i64: 8, 128>}]} {
    %c0_i32 = arith.constant 0 : i32
    %0 = arith.cmpi eq, %arg1, %c0_i32 : i32
    %1 = arith.extui %0 : i1 to i32
    %c0_i32_0 = arith.constant 0 : i32
    %2 = arith.cmpi ne, %1, %c0_i32_0 : i32
    scf.if %2 {
      %cst_11 = arith.constant 0.000000e+00 : f32
      %22 = vector.broadcast %cst_11 : f32 to vector<8x128xf32>
      %c0_12 = arith.constant 0 : index
      %c0_13 = arith.constant 0 : index
      %23 = vector.load %arg4[%c0_12, %c0_13] : memref<8x128xf32, #tpu.memory_space<vmem>>, vector<8x128xf32>
      tpu.vector_store %arg4[%c0_12, %c0_13], %22 {strides = array<i32>} : memref<8x128xf32, #tpu.memory_space<vmem>>, vector<8x128xf32>,
    } else {
    }
    %c0 = arith.constant 0 : index
    %c0_1 = arith.constant 0 : index
    %3 = vector.load %arg2[%c0, %c0_1] : memref<16x128xf32, #tpu.memory_space<vmem>>, vector<16x128xf32>
    %cst = arith.constant 0.000000e+00 : f32
    %4 = vector.broadcast %cst : f32 to vector<16x128xf32>
    %5 = arith.subf %4, %3 : vector<16x128xf32>
    %cst_2 = arith.constant 0.000000e+00 : f32
    %6 = vector.broadcast %cst_2 : f32 to vector<16x128xf32>
    %7 = arith.maximumf %5, %6 : vector<16x128xf32>
    %8 = math.absf %3 : vector<16x128xf32>
    %cst_3 = arith.constant 0.000000e+00 : f32
    %9 = vector.broadcast %cst_3 : f32 to vector<16x128xf32>
    %10 = arith.subf %9, %8 : vector<16x128xf32>
    %11 = math.exp %10 : vector<16x128xf32>
    %12 = math.log1p %11 : vector<16x128xf32>
    %13 = arith.addf %7, %12 : vector<16x128xf32>
    %c0_4 = arith.constant 0 : index
    %c0_5 = arith.constant 0 : index
    %14 = vector.load %arg4[%c0_4, %c0_5] : memref<8x128xf32, #tpu.memory_space<vmem>>, vector<8x128xf32>
    %15 = vector.shape_cast %13 : vector<16x128xf32> to vector<2x8x128xf32>
    %cst_6 = arith.constant dense<0.000000e+00> : vector<8x128xf32>
    %16 = vector.multi_reduction <add>, %15, %cst_6 [0] : vector<2x8x128xf32> to vector<8x128xf32>
    %17 = arith.addf %14, %16 : vector<8x128xf32>
    %c0_7 = arith.constant 0 : index
    %c0_8 = arith.constant 0 : index
    %18 = vector.load %arg4[%c0_7, %c0_8] : memref<8x128xf32, #tpu.memory_space<vmem>>, vector<8x128xf32>
    tpu.vector_store %arg4[%c0_7, %c0_8], %17 {strides = array<i32>} : memref<8x128xf32, #tpu.memory_space<vmem>>, vector<8x128xf32>,
    %c0_i32_9 = arith.constant 0 : i32
    %19 = arith.cmpi eq, %arg1, %c0_i32_9 : i32
    %20 = arith.extui %19 : i1 to i32
    %c0_i32_10 = arith.constant 0 : i32
    %21 = arith.cmpi ne, %20, %c0_i32_10 : i32
    scf.if %21 {
      %c0_11 = arith.constant 0 : index
      %c0_12 = arith.constant 0 : index
      %22 = vector.load %arg4[%c0_11, %c0_12] : memref<8x128xf32, #tpu.memory_space<vmem>>, vector<8x128xf32>
      %c0_13 = arith.constant 0 : index
      %c0_14 = arith.constant 0 : index
      %23 = vector.load %arg3[%c0_13, %c0_14] : memref<8x128xf32, #tpu.memory_space<vmem>>, vector<8x128xf32>
      tpu.vector_store %arg3[%c0_13, %c0_14], %22 {strides = array<i32>} : memref<8x128xf32, #tpu.memory_space<vmem>>, vector<8x128xf32>,
    } else {
    }
    return
  }
  func.func @transform_0(%arg0: i32, %arg1: i32) -> (i32, i32) {
    %c1_i32 = arith.constant 1 : i32
    %0 = arith.muli %arg0, %c1_i32 : i32
    %1 = arith.addi %0, %arg1 : i32
    %c0_i32 = arith.constant 0 : i32
    %c0_i32_0 = arith.constant 0 : i32
    return %1, %c0_i32 : i32, i32
  }
  func.func @transform_1(%arg0: i32, %arg1: i32) -> (i32, i32) {
    %c0_i32 = arith.constant 0 : i32
    %c0_i32_0 = arith.constant 0 : i32
    return %arg0, %c0_i32 : i32, i32
  }
}

</mosaic_0001>

<llo_original>
// kernel: tpu_custom_call.1
$region0: #{tpu_custom_call.1}
  #allocation0 [shape = 'u32[]', space=smem, size = 0x4, offset = 0x4, fixed_abs, tag = 'smem constant byte address 0x4 - core index']
  #allocation1 [shape = 'u32[144,128]{1,0:T(1,128)}', space=vmem, size = 0x12000, scoped, tag = 'internal scratch']
  #allocation2 [shape = 'f32[8,128]{1,0:T(8,128)}', space=vmem, size = 0x1000, scoped, tag = 'scratch operand']
  %s0 = inlined_call_operand.hbm [shape: f32[16,128], index: 0, kind: input, shape index: {}]
  %s1 = inlined_call_operand.hbm [shape: f32[8,128], index: 1, kind: output, shape index: {}]
  %s2 = sld [smem:[#allocation0]]
  $region26: #{tpu_custom_call.1} parent=0
    _
  %s4 = ssub.s32 1, %s2
  %s5 = scalar_select 0, %s4, %s2
  $region1: #{tpu_custom_call.1} parent=0
    #allocation3 [shape = 'u8[8192]{0}', space=vmem, size = 0x2000, scoped, tag = 'input window, operand 0, single buffered']
    #allocation4 [shape = 's32[1]{0}', space=sflag, size = 0x4, scoped, tag = 'scoped memory for tpu_custom_call.1']
    #allocation5 [shape = 's32[1]{0}', space=sflag, size = 0x4, scoped, tag = 'scoped memory for tpu_custom_call.1']
    #allocation6 [shape = 'u8[4096]{0}', space=vmem, size = 0x1000, scoped, tag = 'output window, operand 0, single buffered']
    %6 = vsyncpa [#allocation4], 0
    %7 = vsyncpa [#allocation5], 0
    // Predicated region
    $region2: #{tpu_custom_call.1} parent=1 // pred_check
      _
    $region3: #{tpu_custom_call.1} parent=1 // pred_check_branch
      %9 = sbr.rel (0) target = $region5
    $region4: #{tpu_custom_call.1} parent=1 // pred_region
      %s10 = sadd.s32 0, 0
      %s11 = smul.u32 2, %s10
      %s13 = ssub.s32 256, 256
      %14 = vsyncadd [#allocation4], %s13
      %s15 = smul.addr %s11, 128
      %s16 = scalar_lea.hbm %s0, %s15
      %s17 = sshll.u32 [#allocation3], 4
      %s18 = int_to_ptr.vmem [resolvable:$true] %s17
      %23 = dma.hbm_to_vmem [thread:$0]  %s16, 256, %s18, [#allocation4], 128, 128, 8
    $region5: #{tpu_custom_call.1} parent=1 // pred_fallthru
      _
    // Predicated region
    $region6: #{tpu_custom_call.1} parent=1 // pred_check
      _
    $region7: #{tpu_custom_call.1} parent=1 // pred_check_branch
      %25 = sbr.rel (0) target = $region9
    $region8: #{tpu_custom_call.1} parent=1 // pred_region
      %26 = dma.done [#allocation4], 256
    $region9: #{tpu_custom_call.1} parent=1 // pred_fallthru
      _
    %s27 = sadd.s32 0, 0
    %s28 = smul.u32 2, %s27
    %p29 = scmp.eq.s32.totalorder 0, 0
    // Predicated region
    $region10: #{tpu_custom_call.1} parent=1 // pred_check
      %p30 = pneg %p29
    $region11: #{tpu_custom_call.1} parent=1 // pred_check_branch
      %32 = sbr.rel (%p30) target = $region13
    $region12: #{tpu_custom_call.1} parent=1 // pred_region
      %33 = vst [vmem:[#allocation2] sm:$0xff] 0.0
    $region13: #{tpu_custom_call.1} parent=1 // pred_fallthru
      _
    %v34 = vld [vmem:[#allocation3] sm:$0xff]
    %v35 = vld [vmem:[#allocation3 + $0x8] sm:$0xff]
    %v36 = vsub.f32 0.0, %v34
    %v37 = vsub.f32 0.0, %v35
    %v38 = vmax.f32 %v36, 0.0
    %v39 = vmax.f32 %v37, 0.0
    %v40 = vand.u32 2147483647, %v34
    %v41 = vand.u32 2147483647, %v35
    %v42 = vsub.f32 0.0, %v40
    %v43 = vsub.f32 0.0, %v41
    %v44 = vmul.f32 %v42, 1.442695
    %v45 = vpow.pop %v44
    %v46 = vmul.f32 %v43, 1.442695
    %v47 = vpow.pop %v46
    %v48 = vadd.f32 %v45, 1.0
    %v49 = vlog2.pop %v48
    %v50 = vmul.f32 %v49, 0.6931472
    %v51 = vmul.f32 -0.5, %v45
    %v52 = vadd.f32 %v51, 1.0
    %v53 = vmul.f32 %v52, %v45
    %v54 = vand.u32 2147483647, %v45
    %vm55 = vcmp.lt.f32.partialorder %v54, 0.0004427343
    %v56 = vsel %vm55, %v53, %v50
    %v57 = vadd.f32 %v47, 1.0
    %v58 = vlog2.pop %v57
    %v59 = vmul.f32 %v58, 0.6931472
    %v60 = vmul.f32 -0.5, %v47
    %v61 = vadd.f32 %v60, 1.0
    %v62 = vmul.f32 %v61, %v47
    %v63 = vand.u32 2147483647, %v47
    %vm64 = vcmp.lt.f32.partialorder %v63, 0.0004427343
    %v65 = vsel %vm64, %v62, %v59
    %v66 = vadd.f32 %v38, %v56
    %v67 = vadd.f32 %v39, %v65
    %v68 = vld [vmem:[#allocation2] sm:$0xff]
    %v69 = vadd.f32 %v66, %v67
    %v70 = vadd.f32 %v68, %v69
    %71 = vst [vmem:[#allocation2] sm:$0xff] %v70
    // Predicated region
    $region14: #{tpu_custom_call.1} parent=1 // pred_check
      %p72 = pneg %p29
    $region15: #{tpu_custom_call.1} parent=1 // pred_check_branch
      %74 = sbr.rel (%p72) target = $region17
    $region16: #{tpu_custom_call.1} parent=1 // pred_region
      %v75 = vld [vmem:[#allocation2] sm:$0xff]
      %76 = vst [vmem:[#allocation6] sm:$0xff] %v75
    $region17: #{tpu_custom_call.1} parent=1 // pred_fallthru
      _
    // Predicated region
    $region18: #{tpu_custom_call.1} parent=1 // pred_check
      _
    $region19: #{tpu_custom_call.1} parent=1 // pred_check_branch
      %78 = sbr.rel (0) target = $region21
    $region20: #{tpu_custom_call.1} parent=1 // pred_region
      %s80 = ssub.s32 128, 128
      %81 = vsyncadd [#allocation5], %s80
      %s83 = sshll.u32 [#allocation6], 4
      %s84 = int_to_ptr.vmem [resolvable:$true] %s83
      %86 = dma.vmem_to_hbm [thread:$0]  %s84, 128, %s1, [#allocation5]
    $region21: #{tpu_custom_call.1} parent=1 // pred_fallthru
      _
    // Predicated region
    $region22: #{tpu_custom_call.1} parent=1 // pred_check
      _
    $region23: #{tpu_custom_call.1} parent=1 // pred_check_branch
      %88 = sbr.rel (0) target = $region25
    $region24: #{tpu_custom_call.1} parent=1 // pred_region
      %89 = dma.done [#allocation5], 128
    $region25: #{tpu_custom_call.1} parent=1 // pred_fallthru
      _
    %90 = vsyncpa [#allocation4], 1
    %91 = vsyncpa [#allocation5], 1

</llo_original>
